<compile_context>
chip_gen: v7x
topology: tpu7x:2x2x1
jax: 0.10.0
libtpu: 0.0.40
codegen_flags: <defaults>
</compile_context>

<pallas_src>
import functools

import jax
import jax.numpy as jnp
from jax.experimental import pallas as pl
from jax.experimental.pallas import tpu as pltpu

DIM_IN = 3 + 4 + 27   # 34
DIM_HIDDEN = 16
DIM_OUT = 3
_PAD_OUT = 8          # DIM_OUT padded to a full sublane group for the MXU / store


def _deferred_mlp_kernel(x_ref, w0_ref, w1_ref, w2_ref, o_ref):
    # x_ref : (tile, 34)  row-major tile of the flattened input (last tile may be
    #         partial; junk tail rows stay confined to their own batch column and
    #         Pallas drops writes past the output extent).
    # w0_ref: (34, 16) [in, out]      w1_ref: (16, 16) [out, in]
    # w2_ref: (8, 16)  [out->8, in]   o_ref : (3, tile) feature-major output.
    bf16, f32 = jnp.bfloat16, jnp.float32

    # Explicit bf16 dot operands => guaranteed single-pass MXU matmuls; f32
    # accumulation via preferred_element_type.  relu/sigmoid stay f32.
    xb = x_ref[...].astype(bf16)
    w0 = w0_ref[...].astype(bf16)
    w1 = w1_ref[...].astype(bf16)
    w2 = w2_ref[...].astype(bf16)

    # Layer 0: row-major (the only dot whose batch dim must sit on sublanes,
    # because x streams row-major from HBM).
    h = jnp.dot(xb, w0, preferred_element_type=f32)              # (tile, 16)
    h = jnp.maximum(h, 0.0).astype(bf16)

    # Layers 1 & 2: feature-major.  Contract the minor dims of w1 and h
    # (w1 @ h.T, the natively supported flash-attention MXU form) so the batch
    # lands on the 128-wide lane axis; relu/sigmoid/store then run lane-dense.
    h = jax.lax.dot_general(w1, h, (((1,), (1,)), ((), ())),
                            preferred_element_type=f32)          # (16, tile)
    h = jnp.maximum(h, 0.0).astype(bf16)
    h = jnp.dot(w2, h, preferred_element_type=f32)               # (8, tile)
    y = jax.nn.sigmoid(h)                                        # lane-dense EUP
    # Rows DIM_OUT..7 come from the zero-padded w2 rows (sigmoid(0)); drop them.
    o_ref[...] = y[:DIM_OUT, :].astype(o_ref.dtype)              # (3, tile)


def _round_up(x: int, m: int) -> int:
    return ((x + m - 1) // m) * m


@functools.lru_cache(maxsize=None)
def _num_tensorcores() -> int:
    """TensorCores the 'parallel' grid axis shards across (v7x: 2, v5e/v6e: 1).

    Falls back to 1 when the runtime does not expose a core count, which simply
    skips the extra grid split -- the right call on single-core chips.
    """
    try:
        dev = jax.devices()[0]
        for attr in ("num_cores", "core_count"):
            v = getattr(dev, attr, None)
            if isinstance(v, int) and v > 0:
                return max(1, min(v, 4))
    except Exception:
        pass
    return 1


def _choose_tile(n: int, tile_max: int, n_cores: int) -> int:
    """Near-equal row blocks, multiples of 256 rows, capped at tile_max."""
    blocks = pl.cdiv(n, tile_max)
    # Multi-TensorCore chips: give the parallel grid axis >= 2 blocks per core
    # when there is enough work, so neither core idles.  Never force extra steps
    # on single-core chips (pure ~0.35 us/step overhead there).
    if n_cores > 1 and n >= 2048 * n_cores:
        blocks = max(blocks, 2 * n_cores)
    tile = _round_up(pl.cdiv(n, blocks), 256)
    return max(256, min(tile, tile_max))


@functools.partial(jax.jit, static_argnames=("tile_m", "feature_major_out"))
def deferred_mlp(x, w0, w1, w2, *, tile_m=8192, feature_major_out=False):
    """sigmoid(MLP(x)) for x: [..., 34]; weights in torch (out, in) layout.

    Returns [..., 3] float32 (module semantics), or the lane-dense (3, ...) form
    if feature_major_out=True (skips the final wrapper transpose).
    Passing bf16 x halves the dominant HBM read; numerics are unchanged (the
    MXU already consumes bf16 operands).
    """
    assert x.shape[-1] == DIM_IN, x.shape
    lead = x.shape[:-1]
    x2 = x.reshape(-1, DIM_IN)          # free: only merges leading dims
    n = x2.shape[0]

    # Tiny one-time weight plumbing (~2 KB total): layer 0 wants [in, out],
    # layer 2 wants its 3 output rows padded to a full sublane group of 8.
    w0_io = jnp.transpose(w0)                                           # (34, 16)
    w2_pad = jnp.zeros((_PAD_OUT, DIM_HIDDEN), w2.dtype).at[:DIM_OUT, :].set(w2)

    tile = _choose_tile(n, tile_m, _num_tensorcores())
    grid = (pl.cdiv(n, tile),)          # partial last block; no wrapper pad pass

    out = pl.pallas_call(
        _deferred_mlp_kernel,
        out_shape=jax.ShapeDtypeStruct((DIM_OUT, n), jnp.float32),
        grid_spec=pltpu.PrefetchScalarGridSpec(
            num_scalar_prefetch=0,
            grid=grid,
            in_specs=[
                pl.BlockSpec((tile, DIM_IN), lambda i: (i, 0)),
                # Weights: constant block index -> stay VMEM-resident (~3 KB).
                pl.BlockSpec((DIM_IN, DIM_HIDDEN), lambda i: (0, 0)),
                pl.BlockSpec((DIM_HIDDEN, DIM_HIDDEN), lambda i: (0, 0)),
                pl.BlockSpec((_PAD_OUT, DIM_HIDDEN), lambda i: (0, 0)),
            ],
            # Lane-dense output: batch on the 128-lane axis, dense vst, long
            # contiguous HBM writeback.
            out_specs=pl.BlockSpec((DIM_OUT, tile), lambda i: (0, i)),
        ),
        compiler_params=pltpu.CompilerParams(
            dimension_semantics=("parallel",),
            # ~20-25 MiB used at tile=8192 (double-buffered lane-padded x tiles +
            # f32 intermediates).  48 MiB leaves headroom and still fits v7x's
            # 64 MiB/TC; raise toward ~96 MiB only on v5e/v6e if sweeping
            # tile_m to 16384.
            vmem_limit_bytes=48 * 1024 * 1024,
        ),
    )(x2, w0_io, w1, w2_pad)

    if feature_major_out:
        return out.reshape(DIM_OUT, *lead)
    # Module-facing [..., 3]: one small XLA transpose (24 B/row vs the 136 B/row
    # x read).  Feature-major consumers should use feature_major_out=True.
    return jnp.transpose(out).reshape(*lead, DIM_OUT)


def kaiming_uniform(key, fan_out, fan_in, dtype=jnp.float32):
    # torch.nn.init.kaiming_uniform_ with a=0: bound = sqrt(6 / fan_in).
    # Returned in the PyTorch (out, in) layout.
    bound = (6.0 / fan_in) ** 0.5
    return jax.random.uniform(key, (fan_out, fan_in), dtype, minval=-bound, maxval=bound)


def make_params(key):
    k0, k1, k2 = jax.random.split(key, 3)
    w0 = kaiming_uniform(k0, DIM_HIDDEN, DIM_IN)      # (16, 34)
    w1 = kaiming_uniform(k1, DIM_HIDDEN, DIM_HIDDEN)  # (16, 16)
    w2 = kaiming_uniform(k2, DIM_OUT, DIM_HIDDEN)     # (3, 16)
    return w0, w1, w2


def reference(x, w0, w1, w2, *, bf16_dots):
    """Plain-JAX DeferredMLP.forward (weights in torch (out, in) layout)."""
    def linear(h, w):
        if bf16_dots:  # mirror the kernel's MXU numerics: bf16 operands, f32 acc
            return jnp.dot(h.astype(jnp.bfloat16), w.astype(jnp.bfloat16).T,
                           preferred_element_type=jnp.float32)
        return jnp.dot(h, w.T, precision=jax.lax.Precision.HIGHEST)
    h = jnp.maximum(linear(x, w0), 0.0)
    h = jnp.maximum(linear(h, w1), 0.0)
    return jax.nn.sigmoid(linear(h, w2))


if __name__ == "__main__":
    key = jax.random.PRNGKey(0)
    kx, kp = jax.random.split(key)

    # Small example: 2 "images" of 100 rays each, 34 features per ray
    # (3 rgb + 4 specular + 27 SH view-direction encoding); deliberately not
    # tile-aligned to exercise the partial last block.
    x = jax.random.normal(kx, (2, 100, DIM_IN), dtype=jnp.float32)
    w0, w1, w2 = make_params(kp)

    y = jax.block_until_ready(deferred_mlp(x, w0, w1, w2))
    assert y.shape == (2, 100, DIM_OUT), y.shape

    # Tight check vs. a reference using the same bf16 MXU operands (verifies the
    # kernel plumbing / layouts exactly).
    y_bf = reference(x, w0, w1, w2, bf16_dots=True)
    err_bf = float(jnp.max(jnp.abs(y - y_bf)))
    assert err_bf < 1e-4, err_bf

    # Loose check vs. the full-f32 module math: the only expected drift is from
    # bf16 dot operands on the MXU (~1e-3 post-sigmoid), documented above.
    y_f32 = reference(x, w0, w1, w2, bf16_dots=False)
    err_f32 = float(jnp.max(jnp.abs(y - y_f32)))
    assert err_f32 < 5e-2, err_f32

    print("KERNEL_OK")
</pallas_src>

<mosaic_0001>
module attributes {stable_mosaic.version = 11 : i64} {
  func.func @_deferred_mlp_kernel(%arg0: i32, %arg1: memref<256x34xf32, #tpu.memory_space<vmem>>, %arg2: memref<34x16xf32, #tpu.memory_space<vmem>>, %arg3: memref<16x16xf32, #tpu.memory_space<vmem>>, %arg4: memref<8x16xf32, #tpu.memory_space<vmem>>, %arg5: memref<3x256xf32, #tpu.memory_space<vmem>>) attributes {dimension_semantics = [#tpu.dimension_semantics<parallel>], iteration_bounds = array<i64: 1>, scalar_prefetch = 0 : i64, scratch_operands = 0 : i64, tpu.core_type = #tpu.core_type<tc>, window_params = [{transform_indices = @transform_0, window_bounds = array<i64: 256, 34>}, {pipeline_mode = #tpu.pipeline_mode<synchronous>, transform_indices = @transform_1, window_bounds = array<i64: 34, 16>}, {pipeline_mode = #tpu.pipeline_mode<synchronous>, transform_indices = @transform_2, window_bounds = array<i64: 16, 16>}, {pipeline_mode = #tpu.pipeline_mode<synchronous>, transform_indices = @transform_3, window_bounds = array<i64: 8, 16>}, {transform_indices = @transform_4, window_bounds = array<i64: 3, 256>}]} {
    %c0 = arith.constant 0 : index
    %c0_0 = arith.constant 0 : index
    %0 = vector.load %arg1[%c0, %c0_0] : memref<256x34xf32, #tpu.memory_space<vmem>>, vector<256x34xf32>
    %1 = arith.truncf %0 : vector<256x34xf32> to vector<256x34xbf16>
    %c0_1 = arith.constant 0 : index
    %c0_2 = arith.constant 0 : index
    %2 = vector.load %arg2[%c0_1, %c0_2] : memref<34x16xf32, #tpu.memory_space<vmem>>, vector<34x16xf32>
    %3 = arith.truncf %2 : vector<34x16xf32> to vector<34x16xbf16>
    %c0_3 = arith.constant 0 : index
    %c0_4 = arith.constant 0 : index
    %4 = vector.load %arg3[%c0_3, %c0_4] : memref<16x16xf32, #tpu.memory_space<vmem>>, vector<16x16xf32>
    %5 = arith.truncf %4 : vector<16x16xf32> to vector<16x16xbf16>
    %c0_5 = arith.constant 0 : index
    %c0_6 = arith.constant 0 : index
    %6 = vector.load %arg4[%c0_5, %c0_6] : memref<8x16xf32, #tpu.memory_space<vmem>>, vector<8x16xf32>
    %7 = arith.truncf %6 : vector<8x16xf32> to vector<8x16xbf16>
    %cst = arith.constant dense<0.000000e+00> : vector<256x16xf32>
    %8 = tpu.matmul %1, %3, %cst {dimension_numbers = #tpu.dot_dimension_numbers<[1], [0], [0], [1], [0, 0, 1, 1], [], []>} : vector<256x34xbf16>, vector<34x16xbf16>, vector<256x16xf32> -> vector<256x16xf32>
    %cst_7 = arith.constant 0.000000e+00 : f32
    %9 = vector.broadcast %cst_7 : f32 to vector<256x16xf32>
    %10 = arith.maximumf %8, %9 : vector<256x16xf32>
    %11 = arith.truncf %10 : vector<256x16xf32> to vector<256x16xbf16>
    %cst_8 = arith.constant dense<0.000000e+00> : vector<16x256xf32>
    %12 = tpu.matmul %5, %11, %cst_8 {dimension_numbers = #tpu.dot_dimension_numbers<[1], [1], [0], [0], [0, 0, 1, 0], [], []>} : vector<16x16xbf16>, vector<256x16xbf16>, vector<16x256xf32> -> vector<16x256xf32>
    %cst_9 = arith.constant 0.000000e+00 : f32
    %13 = vector.broadcast %cst_9 : f32 to vector<16x256xf32>
    %14 = arith.maximumf %12, %13 : vector<16x256xf32>
    %15 = arith.truncf %14 : vector<16x256xf32> to vector<16x256xbf16>
    %cst_10 = arith.constant dense<0.000000e+00> : vector<8x256xf32>
    %16 = tpu.matmul %7, %15, %cst_10 {dimension_numbers = #tpu.dot_dimension_numbers<[1], [0], [0], [1], [0, 0, 1, 1], [], []>} : vector<8x16xbf16>, vector<16x256xbf16>, vector<8x256xf32> -> vector<8x256xf32>
    %17 = arith.negf %16 : vector<8x256xf32>
    %18 = math.exp %17 : vector<8x256xf32>
    %cst_11 = arith.constant 1.000000e+00 : f32
    %19 = vector.broadcast %cst_11 : f32 to vector<8x256xf32>
    %20 = arith.addf %19, %18 : vector<8x256xf32>
    %21 = arith.divf %19, %20 : vector<8x256xf32>
    %22 = vector.extract_strided_slice %21 {offsets = [0, 0], sizes = [3, 256], strides = [1, 1]} : vector<8x256xf32> to vector<3x256xf32>
    %c0_12 = arith.constant 0 : index
    %c0_13 = arith.constant 0 : index
    %23 = vector.load %arg5[%c0_12, %c0_13] : memref<3x256xf32, #tpu.memory_space<vmem>>, vector<3x256xf32>
    tpu.vector_store %arg5[%c0_12, %c0_13], %22 {strides = array<i32>} : memref<3x256xf32, #tpu.memory_space<vmem>>, vector<3x256xf32>,
    return
  }
  func.func @transform_0(%arg0: i32) -> (i32, i32) {
    %c0_i32 = arith.constant 0 : i32
    %c0_i32_0 = arith.constant 0 : i32
    return %arg0, %c0_i32 : i32, i32
  }
  func.func @transform_1(%arg0: i32) -> (i32, i32) {
    %c0_i32 = arith.constant 0 : i32
    %c0_i32_0 = arith.constant 0 : i32
    %c0_i32_1 = arith.constant 0 : i32
    return %c0_i32, %c0_i32_0 : i32, i32
  }
  func.func @transform_2(%arg0: i32) -> (i32, i32) {
    %c0_i32 = arith.constant 0 : i32
    %c0_i32_0 = arith.constant 0 : i32
    %c0_i32_1 = arith.constant 0 : i32
    return %c0_i32, %c0_i32_0 : i32, i32
  }
  func.func @transform_3(%arg0: i32) -> (i32, i32) {
    %c0_i32 = arith.constant 0 : i32
    %c0_i32_0 = arith.constant 0 : i32
    %c0_i32_1 = arith.constant 0 : i32
    return %c0_i32, %c0_i32_0 : i32, i32
  }
  func.func @transform_4(%arg0: i32) -> (i32, i32) {
    %c0_i32 = arith.constant 0 : i32
    %c0_i32_0 = arith.constant 0 : i32
    return %c0_i32, %arg0 : i32, i32
  }
}

</mosaic_0001>

<llo_original>
// kernel: deferred_mlp.1
$region0: #{deferred_mlp.1}
  #allocation0 [shape = 'u32[]', space=smem, size = 0x4, offset = 0x4, fixed_abs, tag = 'smem constant byte address 0x4 - core index']
  #allocation1 [shape = 'u32[144,128]{1,0:T(1,128)}', space=vmem, size = 0x12000, scoped, tag = 'internal scratch']
  %s0 = inlined_call_operand.vmem [shape: f32[200,34], index: 0, kind: input, shape index: {}]
  %s1 = inlined_call_operand.vmem [shape: f32[34,16], index: 1, kind: input, shape index: {}]
  %s2 = inlined_call_operand.vmem [shape: f32[16,16], index: 2, kind: input, shape index: {}]
  %s3 = inlined_call_operand.vmem [shape: f32[8,16], index: 3, kind: input, shape index: {}]
  %s4 = inlined_call_operand.vmem [shape: f32[3,200], index: 4, kind: output, shape index: {}]
  %s5 = sld [smem:[#allocation0]]
  $region26: #{deferred_mlp.1} parent=0
    _
  %s7 = ssub.s32 1, %s5
  %s8 = scalar_select 0, %s7, %s5
  // Predicated region
  $region2: #{deferred_mlp.1} parent=0 // pred_check
    _
  $region3: #{deferred_mlp.1} parent=0 // pred_check_branch
    %10 = sbr.rel (0) target = $region5
  $region4: #{deferred_mlp.1} parent=0 // pred_region
    _
  $region5: #{deferred_mlp.1} parent=0 // pred_fallthru
    _
  // Predicated region
  $region6: #{deferred_mlp.1} parent=0 // pred_check
    _
  $region7: #{deferred_mlp.1} parent=0 // pred_check_branch
    %12 = sbr.rel (0) target = $region9
  $region8: #{deferred_mlp.1} parent=0 // pred_region
    _
  $region9: #{deferred_mlp.1} parent=0 // pred_fallthru
    _
  // Predicated region
  $region10: #{deferred_mlp.1} parent=0 // pred_check
    _
  $region11: #{deferred_mlp.1} parent=0 // pred_check_branch
    %14 = sbr.rel (0) target = $region13
  $region12: #{deferred_mlp.1} parent=0 // pred_region
    _
  $region13: #{deferred_mlp.1} parent=0 // pred_fallthru
    _
  // Predicated region
  $region14: #{deferred_mlp.1} parent=0 // pred_check
    _
  $region15: #{deferred_mlp.1} parent=0 // pred_check_branch
    %16 = sbr.rel (0) target = $region17
  $region16: #{deferred_mlp.1} parent=0 // pred_region
    _
  $region17: #{deferred_mlp.1} parent=0 // pred_fallthru
    _
  %v18 = vld [vmem:[%s0] sm:$0xff]
  %v19 = vld [vmem:[%s0 + $0x8] sm:$0xff]
  %v20 = vld [vmem:[%s0 + $0x10] sm:$0xff]
  %v21 = vld [vmem:[%s0 + $0x18] sm:$0xff]
  %v22 = vld [vmem:[%s0 + $0x20] sm:$0xff]
  %v23 = vld [vmem:[%s0 + $0x28] sm:$0xff]
  %v24 = vld [vmem:[%s0 + $0x30] sm:$0xff]
  %v25 = vld [vmem:[%s0 + $0x38] sm:$0xff]
  %v26 = vld [vmem:[%s0 + $0x40] sm:$0xff]
  %v27 = vld [vmem:[%s0 + $0x48] sm:$0xff]
  %v28 = vld [vmem:[%s0 + $0x50] sm:$0xff]
  %v29 = vld [vmem:[%s0 + $0x58] sm:$0xff]
  %v30 = vld [vmem:[%s0 + $0x60] sm:$0xff]
  %v31 = vld [vmem:[%s0 + $0x68] sm:$0xff]
  %v32 = vld [vmem:[%s0 + $0x70] sm:$0xff]
  %v33 = vld [vmem:[%s0 + $0x78] sm:$0xff]
  %v34 = vld [vmem:[%s0 + $0x80] sm:$0xff]
  %v35 = vld [vmem:[%s0 + $0x88] sm:$0xff]
  %v36 = vld [vmem:[%s0 + $0x90] sm:$0xff]
  %v37 = vld [vmem:[%s0 + $0x98] sm:$0xff]
  %v38 = vld [vmem:[%s0 + $0xa0] sm:$0xff]
  %v39 = vld [vmem:[%s0 + $0xa8] sm:$0xff]
  %v40 = vld [vmem:[%s0 + $0xb0] sm:$0xff]
  %v41 = vld [vmem:[%s0 + $0xb8] sm:$0xff]
  %v42 = vld [vmem:[%s0 + $0xc0] sm:$0xff]
  %v43 = vld [vmem:[%s0 + $0xc8] sm:$0xff]
  %v44 = vld [vmem:[%s0 + $0xd0] sm:$0xff]
  %v45 = vld [vmem:[%s0 + $0xd8] sm:$0xff]
  %v46 = vld [vmem:[%s0 + $0xe0] sm:$0xff]
  %v47 = vld [vmem:[%s0 + $0xe8] sm:$0xff]
  %v48 = vld [vmem:[%s0 + $0xf0] sm:$0xff]
  %v49 = vld [vmem:[%s0 + $0xf8] sm:$0xff]
  %v50 = vpack.c.bf16 %v19, %v18
  %v51 = vpack.c.bf16 %v21, %v20
  %v52 = vpack.c.bf16 %v23, %v22
  %v53 = vpack.c.bf16 %v25, %v24
  %v54 = vpack.c.bf16 %v27, %v26
  %v55 = vpack.c.bf16 %v29, %v28
  %v56 = vpack.c.bf16 %v31, %v30
  %v57 = vpack.c.bf16 %v33, %v32
  %v58 = vpack.c.bf16 %v35, %v34
  %v59 = vpack.c.bf16 %v37, %v36
  %v60 = vpack.c.bf16 %v39, %v38
  %v61 = vpack.c.bf16 %v41, %v40
  %v62 = vpack.c.bf16 %v43, %v42
  %v63 = vpack.c.bf16 %v45, %v44
  %v64 = vpack.c.bf16 %v47, %v46
  %v65 = vpack.c.bf16 %v49, %v48
  %v66 = vld [vmem:[%s1] sm:$0xff]
  %v67 = vld [vmem:[%s1 + $0x8] sm:$0xff]
  %v68 = vld [vmem:[%s1 + $0x10] sm:$0xff]
  %v69 = vld [vmem:[%s1 + $0x18] sm:$0xff]
  %v70 = vld [vmem:[%s1 + $0x20] sm:$0x3]
  %v71 = vpack.c.bf16 %v67, %v66
  %v72 = vpack.c.bf16 %v69, %v68
  %v73 = vpack.c.bf16 %v70, %v70
  %v74 = vld [vmem:[%s2] sm:$0xff]
  %v75 = vld [vmem:[%s2 + $0x8] sm:$0xff]
  %v76 = vpack.c.bf16 %v75, %v74
  %v77 = vld [vmem:[%s3] sm:$0xff]
  %v78 = vpack.c.bf16 %v77, %v77
  %vm79 = vcmask 277504
  %v81 = vsel %vm79, %v50, 0
  %v84 = vsel %vm79, %v51, 0
  %v87 = vsel %vm79, %v52, 0
  %v90 = vsel %vm79, %v53, 0
  %v93 = vsel %vm79, %v54, 0
  %v96 = vsel %vm79, %v55, 0
  %v99 = vsel %vm79, %v56, 0
  %v102 = vsel %vm79, %v57, 0
  %v105 = vsel %vm79, %v58, 0
  %v108 = vsel %vm79, %v59, 0
  %v111 = vsel %vm79, %v60, 0
  %v114 = vsel %vm79, %v61, 0
  %v117 = vsel %vm79, %v62, 0
  %v120 = vsel %vm79, %v63, 0
  %v123 = vsel %vm79, %v64, 0
  %v126 = vsel %vm79, %v65, 0
  %vm128 = vcmask 1040384
  %v130 = vsel %vm128, %v73, 0
  %132 = vmatprep.subr.bf16.mxu0 0
  %133 = vmatpush1.bf16.msra.mxu0 %v71
  %134 = vmatprep.subr.bf16.mxu0 0
  %135 = vmatpush1.bf16.msra.mxu0 %v72
  %136 = vmatprep.subr.bf16.mxu0 0
  %137 = vmatpush1.bf16.msra.mxu0 %v130
  %138 = vmatprep.subr.bf16.mxu0 0
  %139 = vmatpush1.bf16.msra.mxu0 0
  %140 = vmatprep.subr.bf16.mxu0 0
  %141 = vmatpush1.bf16.msra.mxu0 0
  %142 = vmatprep.subr.bf16.mxu0 0
  %143 = vmatpush1.bf16.msra.mxu0 0
  %144 = vmatprep.subr.bf16.mxu0 0
  %145 = vmatpush1.bf16.msra.mxu0 0
  %146 = vmatprep.subr.bf16.mxu0 0
  %147 = vmatpush1.bf16.msra.mxu0 0
  %148 = vmatprep.subr.bf16.mxu0 0
  %149 = vmatpush1.bf16.msra.mxu0 0
  %150 = vmatprep.subr.bf16.mxu0 0
  %151 = vmatpush1.bf16.msra.mxu0 0
  %152 = vmatprep.subr.bf16.mxu0 0
  %153 = vmatpush1.bf16.msra.mxu0 0
  %154 = vmatprep.subr.bf16.mxu0 0
  %155 = vmatpush1.bf16.msra.mxu0 0
  %156 = vmatprep.subr.bf16.mxu0 0
  %157 = vmatpush1.bf16.msra.mxu0 0
  %158 = vmatprep.subr.bf16.mxu0 0
  %159 = vmatpush1.bf16.msra.mxu0 0
  %160 = vmatprep.subr.bf16.mxu0 0
  %161 = vmatpush1.bf16.msra.mxu0 0
  %162 = vmatprep.subr.bf16.mxu0 0
  %163 = vmatpush1.bf16.msra.mxu0 0
  %164 = vmatprep.mubr.bf16.mxu0 0
  %165 = vmatmul.mubr.bf16.gmra.mrb[0].mxu0 %v81
  %v166 = vpop.f32.mrb[0].mxu0
  %v167 = vadd.f32 0.0, %v166
  %v168 = vpop.f32.mrb[0].mxu0
  %v169 = vpop.f32.mrb[0].mxu0
  %v170 = vadd.f32 0.0, %v169
  %v171 = vpop.f32.mrb[0].mxu0
  %172 = vmatprep.mubr.bf16.mxu0 0
  %173 = vmatmul.mubr.bf16.gmra.mrb[0].mxu0 %v84
  %v174 = vpop.f32.mrb[0].mxu0
  %v175 = vadd.f32 0.0, %v174
  %v176 = vpop.f32.mrb[0].mxu0
  %v177 = vpop.f32.mrb[0].mxu0
  %v178 = vadd.f32 0.0, %v177
  %v179 = vpop.f32.mrb[0].mxu0
  %180 = vmatprep.mubr.bf16.mxu0 0
  %181 = vmatmul.mubr.bf16.gmra.mrb[0].mxu0 %v87
  %v182 = vpop.f32.mrb[0].mxu0
  %v183 = vadd.f32 0.0, %v182
  %v184 = vpop.f32.mrb[0].mxu0
  %v185 = vpop.f32.mrb[0].mxu0
  %v186 = vadd.f32 0.0, %v185
  %v187 = vpop.f32.mrb[0].mxu0
  %188 = vmatprep.mubr.bf16.mxu0 0
  %189 = vmatmul.mubr.bf16.gmra.mrb[0].mxu0 %v90
  %v190 = vpop.f32.mrb[0].mxu0
  %v191 = vadd.f32 0.0, %v190
  %v192 = vpop.f32.mrb[0].mxu0
  %v193 = vpop.f32.mrb[0].mxu0
  %v194 = vadd.f32 0.0, %v193
  %v195 = vpop.f32.mrb[0].mxu0
  %196 = vmatprep.mubr.bf16.mxu0 0
  %197 = vmatmul.mubr.bf16.gmra.mrb[0].mxu0 %v93
  %v198 = vpop.f32.mrb[0].mxu0
  %v199 = vadd.f32 0.0, %v198
  %v200 = vpop.f32.mrb[0].mxu0
  %v201 = vpop.f32.mrb[0].mxu0
  %v202 = vadd.f32 0.0, %v201
  %v203 = vpop.f32.mrb[0].mxu0
  %204 = vmatprep.mubr.bf16.mxu0 0
  %205 = vmatmul.mubr.bf16.gmra.mrb[0].mxu0 %v96
  %v206 = vpop.f32.mrb[0].mxu0
  %v207 = vadd.f32 0.0, %v206
  %v208 = vpop.f32.mrb[0].mxu0
  %v209 = vpop.f32.mrb[0].mxu0
  %v210 = vadd.f32 0.0, %v209
  %v211 = vpop.f32.mrb[0].mxu0
  %212 = vmatprep.mubr.bf16.mxu0 0
  %213 = vmatmul.mubr.bf16.gmra.mrb[0].mxu0 %v99
  %v214 = vpop.f32.mrb[0].mxu0
  %v215 = vadd.f32 0.0, %v214
  %v216 = vpop.f32.mrb[0].mxu0
  %v217 = vpop.f32.mrb[0].mxu0
  %v218 = vadd.f32 0.0, %v217
  %v219 = vpop.f32.mrb[0].mxu0
  %220 = vmatprep.mubr.bf16.mxu0 0
  %221 = vmatmul.mubr.bf16.gmra.mrb[0].mxu0 %v102
  %v222 = vpop.f32.mrb[0].mxu0
  %v223 = vadd.f32 0.0, %v222
  %v224 = vpop.f32.mrb[0].mxu0
  %v225 = vpop.f32.mrb[0].mxu0
  %v226 = vadd.f32 0.0, %v225
  %v227 = vpop.f32.mrb[0].mxu0
  %228 = vmatprep.mubr.bf16.mxu0 0
  %229 = vmatmul.mubr.bf16.gmra.mrb[0].mxu0 %v105
  %v230 = vpop.f32.mrb[0].mxu0
  %v231 = vadd.f32 0.0, %v230
  %v232 = vpop.f32.mrb[0].mxu0
  %v233 = vpop.f32.mrb[0].mxu0
  %v234 = vadd.f32 0.0, %v233
  %v235 = vpop.f32.mrb[0].mxu0
  %236 = vmatprep.mubr.bf16.mxu0 0
  %237 = vmatmul.mubr.bf16.gmra.mrb[0].mxu0 %v108
  %v238 = vpop.f32.mrb[0].mxu0
  %v239 = vadd.f32 0.0, %v238
  %v240 = vpop.f32.mrb[0].mxu0
  %v241 = vpop.f32.mrb[0].mxu0
  %v242 = vadd.f32 0.0, %v241
  %v243 = vpop.f32.mrb[0].mxu0
  %244 = vmatprep.mubr.bf16.mxu0 0
  %245 = vmatmul.mubr.bf16.gmra.mrb[0].mxu0 %v111
  %v246 = vpop.f32.mrb[0].mxu0
  %v247 = vadd.f32 0.0, %v246
  %v248 = vpop.f32.mrb[0].mxu0
  %v249 = vpop.f32.mrb[0].mxu0
  %v250 = vadd.f32 0.0, %v249
  %v251 = vpop.f32.mrb[0].mxu0
  %252 = vmatprep.mubr.bf16.mxu0 0
  %253 = vmatmul.mubr.bf16.gmra.mrb[0].mxu0 %v114
  %v254 = vpop.f32.mrb[0].mxu0
  %v255 = vadd.f32 0.0, %v254
  %v256 = vpop.f32.mrb[0].mxu0
  %v257 = vpop.f32.mrb[0].mxu0
  %v258 = vadd.f32 0.0, %v257
  %v259 = vpop.f32.mrb[0].mxu0
  %260 = vmatprep.mubr.bf16.mxu0 0
  %261 = vmatmul.mubr.bf16.gmra.mrb[0].mxu0 %v117
  %v262 = vpop.f32.mrb[0].mxu0
  %v263 = vadd.f32 0.0, %v262
  %v264 = vpop.f32.mrb[0].mxu0
  %v265 = vpop.f32.mrb[0].mxu0
  %v266 = vadd.f32 0.0, %v265
  %v267 = vpop.f32.mrb[0].mxu0
  %268 = vmatprep.mubr.bf16.mxu0 0
  %269 = vmatmul.mubr.bf16.gmra.mrb[0].mxu0 %v120
  %v270 = vpop.f32.mrb[0].mxu0
  %v271 = vadd.f32 0.0, %v270
  %v272 = vpop.f32.mrb[0].mxu0
  %v273 = vpop.f32.mrb[0].mxu0
  %v274 = vadd.f32 0.0, %v273
  %v275 = vpop.f32.mrb[0].mxu0
  %276 = vmatprep.mubr.bf16.mxu0 0
  %277 = vmatmul.mubr.bf16.gmra.mrb[0].mxu0 %v123
  %v278 = vpop.f32.mrb[0].mxu0
  %v279 = vadd.f32 0.0, %v278
  %v280 = vpop.f32.mrb[0].mxu0
  %v281 = vpop.f32.mrb[0].mxu0
  %v282 = vadd.f32 0.0, %v281
  %v283 = vpop.f32.mrb[0].mxu0
  %284 = vmatprep.mubr.bf16.mxu0 0
  %285 = vmatmul.mubr.bf16.gmra.mrb[0].mxu0 %v126
  %v286 = vpop.f32.mrb[0].mxu0
  %v287 = vadd.f32 0.0, %v286
  %v288 = vpop.f32.mrb[0].mxu0
  %v289 = vpop.f32.mrb[0].mxu0
  %v290 = vadd.f32 0.0, %v289
  %v291 = vpop.f32.mrb[0].mxu0
  %292 = vdwg.mxu0
  %v293 = vmax.f32 %v167, 0.0
  %v294 = vmax.f32 %v170, 0.0
  %v295 = vmax.f32 %v175, 0.0
  %v296 = vmax.f32 %v178, 0.0
  %v297 = vmax.f32 %v183, 0.0
  %v298 = vmax.f32 %v186, 0.0
  %v299 = vmax.f32 %v191, 0.0
  %v300 = vmax.f32 %v194, 0.0
  %v301 = vmax.f32 %v199, 0.0
  %v302 = vmax.f32 %v202, 0.0
  %v303 = vmax.f32 %v207, 0.0
  %v304 = vmax.f32 %v210, 0.0
  %v305 = vmax.f32 %v215, 0.0
  %v306 = vmax.f32 %v218, 0.0
  %v307 = vmax.f32 %v223, 0.0
  %v308 = vmax.f32 %v226, 0.0
  %v309 = vmax.f32 %v231, 0.0
  %v310 = vmax.f32 %v234, 0.0
  %v311 = vmax.f32 %v239, 0.0
  %v312 = vmax.f32 %v242, 0.0
  %v313 = vmax.f32 %v247, 0.0
  %v314 = vmax.f32 %v250, 0.0
  %v315 = vmax.f32 %v255, 0.0
  %v316 = vmax.f32 %v258, 0.0
  %v317 = vmax.f32 %v263, 0.0
  %v318 = vmax.f32 %v266, 0.0
  %v319 = vmax.f32 %v271, 0.0
  %v320 = vmax.f32 %v274, 0.0
  %v321 = vmax.f32 %v279, 0.0
  %v322 = vmax.f32 %v282, 0.0
  %v323 = vmax.f32 %v287, 0.0
  %v324 = vmax.f32 %v290, 0.0
  %v325 = vpack.c.bf16 %v294, %v293
  %v326 = vpack.c.bf16 %v296, %v295
  %v327 = vpack.c.bf16 %v298, %v297
  %v328 = vpack.c.bf16 %v300, %v299
  %v329 = vpack.c.bf16 %v302, %v301
  %v330 = vpack.c.bf16 %v304, %v303
  %v331 = vpack.c.bf16 %v306, %v305
  %v332 = vpack.c.bf16 %v308, %v307
  %v333 = vpack.c.bf16 %v310, %v309
  %v334 = vpack.c.bf16 %v312, %v311
  %v335 = vpack.c.bf16 %v314, %v313
  %v336 = vpack.c.bf16 %v316, %v315
  %v337 = vpack.c.bf16 %v318, %v317
  %v338 = vpack.c.bf16 %v320, %v319
  %v339 = vpack.c.bf16 %v322, %v321
  %v340 = vpack.c.bf16 %v324, %v323
  %vm341 = vcmask 130048
  %v343 = vsel %vm341, %v76, 0
  %v346 = vsel %vm341, %v325, 0
  %v349 = vsel %vm341, %v326, 0
  %v352 = vsel %vm341, %v327, 0
  %v355 = vsel %vm341, %v328, 0
  %v358 = vsel %vm341, %v329, 0
  %v361 = vsel %vm341, %v330, 0
  %v364 = vsel %vm341, %v331, 0
  %v367 = vsel %vm341, %v332, 0
  %v370 = vsel %vm341, %v333, 0
  %v373 = vsel %vm341, %v334, 0
  %v376 = vsel %vm341, %v335, 0
  %v379 = vsel %vm341, %v336, 0
  %v382 = vsel %vm341, %v337, 0
  %v385 = vsel %vm341, %v338, 0
  %v388 = vsel %vm341, %v339, 0
  %v391 = vsel %vm341, %v340, 0
  %393 = vmatprep.subr.bf16.mxu0 0
  %394 = vmatpush1.bf16.xpose.msra.mxu0 %v346
  %395 = vmatprep.subr.bf16.mxu0 0
  %396 = vmatpush1.bf16.xpose.msra.mxu0 %v349
  %397 = vmatprep.subr.bf16.mxu0 0
  %398 = vmatpush1.bf16.xpose.msra.mxu0 %v352
  %399 = vmatprep.subr.bf16.mxu0 0
  %400 = vmatpush1.bf16.xpose.msra.mxu0 %v355
  %401 = vmatprep.subr.bf16.mxu0 0
  %402 = vmatpush1.bf16.xpose.msra.mxu0 %v358
  %403 = vmatprep.subr.bf16.mxu0 0
  %404 = vmatpush1.bf16.xpose.msra.mxu0 %v361
  %405 = vmatprep.subr.bf16.mxu0 0
  %406 = vmatpush1.bf16.xpose.msra.mxu0 %v364
  %407 = vmatprep.subr.bf16.mxu0 0
  %408 = vmatpush1.bf16.xpose.msra.mxu0 %v367
  %409 = vmatprep.subr.bf16.mxu0 0
  %410 = vmatpush1.bf16.xpose.msra.mxu0 %v370
  %411 = vmatprep.subr.bf16.mxu0 0
  %412 = vmatpush1.bf16.xpose.msra.mxu0 %v373
  %413 = vmatprep.subr.bf16.mxu0 0
  %414 = vmatpush1.bf16.xpose.msra.mxu0 %v376
  %415 = vmatprep.subr.bf16.mxu0 0
  %416 = vmatpush1.bf16.xpose.msra.mxu0 %v379
  %417 = vmatprep.subr.bf16.mxu0 0
  %418 = vmatpush1.bf16.xpose.msra.mxu0 %v382
  %419 = vmatprep.subr.bf16.mxu0 0
  %420 = vmatpush1.bf16.xpose.msra.mxu0 %v385
  %421 = vmatprep.subr.bf16.mxu0 0
  %422 = vmatpush1.bf16.xpose.msra.mxu0 %v388
  %423 = vmatprep.subr.bf16.mxu0 0
  %424 = vmatpush1.bf16.xpose.msra.mxu0 %v391
  %425 = vmatprep.mubr.bf16.mxu0 0
  %426 = vmatmul.mubr.bf16.gmra.mrb[0].mxu0 %v343
  %v427 = vpop.f32.mrb[0].mxu0
  %v428 = vadd.f32 0.0, %v427
  %v429 = vpop.f32.mrb[0].mxu0
  %v430 = vadd.f32 0.0, %v429
  %v431 = vpop.f32.mrb[0].mxu0
  %v432 = vadd.f32 0.0, %v431
  %v433 = vpop.f32.mrb[0].mxu0
  %v434 = vadd.f32 0.0, %v433
  %435 = vdwg.mxu0
  %v436 = vmax.f32 %v428, 0.0
  %v437 = vmax.f32 %v430, 0.0
  %v438 = vmax.f32 %v432, 0.0
  %v439 = vmax.f32 %v434, 0.0
  %v440 = vpack.c.bf16 %v438, %v436
  %v441 = vpack.c.bf16 %v439, %v437
  %v443 = vsel %vm341, %v78, 0
  %445 = vmatprep.subr.bf16.mxu0 %v441
  %446 = vmatpush1.bf16.msra.mxu0 %v440
  %447 = vmatprep.subr.bf16.mxu0 0
  %448 = vmatpush1.bf16.msra.mxu0 0
  %449 = vmatprep.subr.bf16.mxu0 0
  %450 = vmatpush1.bf16.msra.mxu0 0
  %451 = vmatprep.subr.bf16.mxu0 0
  %452 = vmatpush1.bf16.msra.mxu0 0
  %453 = vmatprep.subr.bf16.mxu0 0
  %454 = vmatpush1.bf16.msra.mxu0 0
  %455 = vmatprep.subr.bf16.mxu0 0
  %456 = vmatpush1.bf16.msra.mxu0 0
  %457 = vmatprep.subr.bf16.mxu0 0
  %458 = vmatpush1.bf16.msra.mxu0 0
  %459 = vmatprep.subr.bf16.mxu0 0
  %460 = vmatpush1.bf16.msra.mxu0 0
  %461 = vmatprep.subr.bf16.mxu0 0
  %462 = vmatpush1.bf16.msra.mxu0 0
  %463 = vmatprep.subr.bf16.mxu0 0
  %464 = vmatpush1.bf16.msra.mxu0 0
  %465 = vmatprep.subr.bf16.mxu0 0
  %466 = vmatpush1.bf16.msra.mxu0 0
  %467 = vmatprep.subr.bf16.mxu0 0
  %468 = vmatpush1.bf16.msra.mxu0 0
  %469 = vmatprep.subr.bf16.mxu0 0
  %470 = vmatpush1.bf16.msra.mxu0 0
  %471 = vmatprep.subr.bf16.mxu0 0
  %472 = vmatpush1.bf16.msra.mxu0 0
  %473 = vmatprep.subr.bf16.mxu0 0
  %474 = vmatpush1.bf16.msra.mxu0 0
  %475 = vmatprep.subr.bf16.mxu0 0
  %476 = vmatpush1.bf16.msra.mxu0 0
  %477 = vmatprep.mubr.bf16.mxu0 0
  %478 = vmatmul.mubr.bf16.gmra.mrb[0].mxu0 %v443
  %v479 = vpop.f32.mrb[0].mxu0
  %v480 = vadd.f32 0.0, %v479
  %v481 = vpop.f32.mrb[0].mxu0
  %v482 = vadd.f32 0.0, %v481
  %v483 = vpop.f32.mrb[0].mxu0
  %v484 = vpop.f32.mrb[0].mxu0
  %485 = vdwg.mxu0
  %v486 = vxor.u32 %v480, 2147483648
  %v487 = vxor.u32 %v482, 2147483648
  %v488 = vmul.f32 %v486, 1.442695
  %v489 = vpow.pop %v488
  %v490 = vmul.f32 %v487, 1.442695
  %v491 = vpow.pop %v490
  %v492 = vadd.f32 %v489, 1.0
  %v493 = vadd.f32 %v491, 1.0
  %v494 = vrcp.pop %v492
  %v495 = vmul.f32 1.0, %v494
  %v496 = vrcp.pop %v493
  %v497 = vmul.f32 1.0, %v496
  %v500 = vcombine.low %v495, %v497
  %502 = vst [vmem:[%s4] sm:$0x77] %v500
  // Predicated region
  $region18: #{deferred_mlp.1} parent=0 // pred_check
    _
  $region19: #{deferred_mlp.1} parent=0 // pred_check_branch
    %504 = sbr.rel (0) target = $region21
  $region20: #{deferred_mlp.1} parent=0 // pred_region
    _
  $region21: #{deferred_mlp.1} parent=0 // pred_fallthru
    _
  // Predicated region
  $region22: #{deferred_mlp.1} parent=0 // pred_check
    _
  $region23: #{deferred_mlp.1} parent=0 // pred_check_branch
    %506 = sbr.rel (0) target = $region25
  $region24: #{deferred_mlp.1} parent=0 // pred_region
    _
  $region25: #{deferred_mlp.1} parent=0 // pred_fallthru
    _

</llo_original>
